<compile_context>
chip_gen: v6e
topology: v6e:2x2x1
jax: 0.10.0
libtpu: 0.0.40
codegen_flags: <defaults>
</compile_context>

<pallas_src>
import functools

import jax
import jax.numpy as jnp
from jax.experimental import pallas as pl
from jax.experimental.pallas import tpu as pltpu

# Explicit scoped-VMEM limit: above the 16/32 MiB v5e/v6e defaults, below every
# generation's physical capacity (incl. v7x's 64 MiB).
_VMEM_LIMIT = 48 * 1024 * 1024
# Budget for one double-buffered (gate + up + down) weight chunk.
_WEIGHT_CHUNK_BUDGET = 24 * 1024 * 1024


def _round_up(x, m):
    return ((x + m - 1) // m) * m


def _sublane_pack(dtype):
    return 8 if jnp.dtype(dtype).itemsize >= 4 else 16


def _pick_inner_chunk(total, hidden, itemsize, budget=_WEIGHT_CHUNK_BUDGET):
    """Largest chunk of the intermediate dim whose double-buffered gate/up/down
    weight blocks fit within `budget` bytes.  Must divide `total` evenly."""
    if total <= 128 or total % 128 != 0:
        return total
    cap = max(128, ((budget // (6 * hidden * itemsize)) // 128) * 128)
    chunk = min(total, cap)
    while total % chunk != 0:
        chunk -= 128
    return max(chunk, 128)


# ----------------------------------------------------------------------------
# Kernel 1: fused shared-expert MLP + router gate.
# grid = (token_tiles, shared_I_chunks); x tile resident across the I axis,
# f32 accumulator scratch, logits computed once per token tile.
# ----------------------------------------------------------------------------
def _shared_gate_kernel(x_ref, wg_ref, wu_ref, wdn_ref, wgate_ref,
                        shared_ref, logits_ref, acc_ref):
    i = pl.program_id(1)
    x = x_ref[...]

    @pl.when(i == 0)
    def _init():
        acc_ref[...] = jnp.zeros_like(acc_ref)
        # Router gate reuses the resident x tile; logits lane dim is padded to
        # a multiple of 128 so this store is an unmasked vst.
        logits_ref[...] = jnp.dot(x, wgate_ref[...],
                                  preferred_element_type=jnp.float32)

    gate = jnp.dot(x, wg_ref[...], preferred_element_type=jnp.float32)
    up = jnp.dot(x, wu_ref[...], preferred_element_type=jnp.float32)
    h = gate * jax.lax.logistic(gate) * up                       # SiluAndMul
    acc_ref[...] += jnp.dot(h.astype(wdn_ref.dtype), wdn_ref[...],
                            preferred_element_type=jnp.float32)

    @pl.when(i == pl.num_programs(1) - 1)
    def _finalize():
        shared_ref[...] = acc_ref[...].astype(shared_ref.dtype)


def shared_and_gate(x, wg, wu, wdn, wgate_padded, *, token_tile):
    T, H = x.shape
    Is = wg.shape[1]
    Ep = wgate_padded.shape[1]
    tis = _pick_inner_chunk(Is, H, wg.dtype.itemsize)
    nt = T // token_tile
    ni = Is // tis
    return pl.pallas_call(
        _shared_gate_kernel,
        out_shape=(jax.ShapeDtypeStruct((T, H), x.dtype),
                   jax.ShapeDtypeStruct((T, Ep), jnp.float32)),
        grid=(nt, ni),
        in_specs=[
            pl.BlockSpec((token_tile, H), lambda t, i: (t, 0)),
            pl.BlockSpec((H, tis), lambda t, i: (0, i)),
            pl.BlockSpec((H, tis), lambda t, i: (0, i)),
            pl.BlockSpec((tis, H), lambda t, i: (i, 0)),
            pl.BlockSpec((H, Ep), lambda t, i: (0, 0)),   # resident
        ],
        out_specs=[
            pl.BlockSpec((token_tile, H), lambda t, i: (t, 0)),
            pl.BlockSpec((token_tile, Ep), lambda t, i: (t, 0)),
        ],
        scratch_shapes=[pltpu.VMEM((token_tile, H), jnp.float32)],
        compiler_params=pltpu.CompilerParams(
            dimension_semantics=("parallel", "arbitrary"),
            vmem_limit_bytes=_VMEM_LIMIT),
    )(x, wg, wu, wdn, wgate_padded)


# ----------------------------------------------------------------------------
# Kernel 2: routed experts as a token-sorted grouped GEMM.
# grid = (row_blocks, I_chunks); each row block holds row_tile token->expert
# assignments for ONE expert (scalar-prefetched expert id drives the weight
# index_maps), f32 accumulator over the I axis, routing weight (already scaled
# by routed_scaling_factor) applied to the lane-dense h chunk.
# ----------------------------------------------------------------------------
def _routed_group_kernel(block_expert_ref, block_valid_ref,     # SMEM prefetch
                         x_ref, w_ref, wg_ref, wu_ref, wdn_ref,
                         y_ref, acc_ref):
    g = pl.program_id(0)
    i = pl.program_id(1)

    @pl.when(i == 0)
    def _init():
        acc_ref[...] = jnp.zeros_like(acc_ref)

    # Trailing capacity blocks (beyond the data-dependent padded row count)
    # skip both MXU passes; their weight index_map repeats the last real
    # expert so the weight DMA is deduplicated by the pipeline.
    @pl.when(block_valid_ref[g] != 0)
    def _compute():
        x = x_ref[...]
        gate = jnp.dot(x, wg_ref[0], preferred_element_type=jnp.float32)
        up = jnp.dot(x, wu_ref[0], preferred_element_type=jnp.float32)
        h = gate * jax.lax.logistic(gate) * up                   # SiluAndMul
        h = h * w_ref[...]     # per-row routing weight * routed_scaling_factor
        acc_ref[...] += jnp.dot(h.astype(wdn_ref.dtype), wdn_ref[0],
                                preferred_element_type=jnp.float32)

    @pl.when(i == pl.num_programs(1) - 1)
    def _finalize():
        y_ref[...] = acc_ref[...]


def routed_experts_grouped(x, wg, wu, wdn, topk_w, topk_ids, *,
                           scale, row_tile=None):
    """x:[T,H]  wg/wu:[E,H,I]  wdn:[E,I,H]  topk_w/topk_ids:[T,K] -> [T,H] f32."""
    T, H = x.shape
    E, _, I = wg.shape
    K = topk_ids.shape[1]
    pack = _sublane_pack(x.dtype)

    rows = T * K
    if row_tile is None:
        # ~average assignments per active expert; 256 fills the v6e/v7x MXU for
        # prefill, small tiles keep decode blocks cheap.
        avg = max(1, rows // max(1, min(E, rows)))
        row_tile = min(256, _round_up(avg, pack))
    row_tile = _round_up(max(int(row_tile), pack), pack)

    # ---- token -> (expert-sorted, block-padded) permutation (plain JAX) ----
    flat_expert = topk_ids.reshape(-1).astype(jnp.int32)
    flat_weight = (topk_w.astype(jnp.float32) * scale).reshape(-1)
    flat_token = jnp.arange(rows, dtype=jnp.int32) // K

    order = jnp.argsort(flat_expert)
    s_expert = flat_expert[order]
    s_token = flat_token[order]
    s_weight = flat_weight[order]

    counts = jnp.bincount(flat_expert, length=E)                  # [E]
    padded = ((counts + row_tile - 1) // row_tile) * row_tile     # [E]
    counts_excl = jnp.concatenate(
        [jnp.zeros((1,), counts.dtype), jnp.cumsum(counts)[:-1]])
    starts = jnp.concatenate(
        [jnp.zeros((1,), padded.dtype), jnp.cumsum(padded)[:-1]])
    rank = jnp.arange(rows, dtype=jnp.int32) - counts_excl[s_expert].astype(jnp.int32)
    dest = starts[s_expert].astype(jnp.int32) + rank

    # Static worst-case capacity: each active expert wastes < row_tile rows.
    cap_rows = _round_up(rows + min(E, rows) * (row_tile - 1), row_tile)
    G = cap_rows // row_tile

    row_token = jnp.zeros((cap_rows,), jnp.int32).at[dest].set(s_token)
    row_weight = jnp.zeros((cap_rows,), jnp.float32).at[dest].set(s_weight)
    row_expert = jnp.zeros((cap_rows,), jnp.int32).at[dest].set(s_expert)

    total_padded = jnp.sum(padded).astype(jnp.int32)
    block_start = jnp.arange(G, dtype=jnp.int32) * row_tile
    block_valid = (block_start < total_padded).astype(jnp.int32)
    # First row of every valid block is a real row, so its expert id is set;
    # invalid trailing blocks inherit the last real expert (DMA dedup).
    filled = jnp.where(block_valid == 1, row_expert[block_start], -1)
    block_expert = jnp.maximum(jax.lax.cummax(filled, axis=0), 0).astype(jnp.int32)

    x_sorted = jnp.take(x, row_token, axis=0)                     # [cap_rows, H]
    w_sorted = row_weight.reshape(cap_rows, 1)                    # [cap_rows, 1]

    ti = _pick_inner_chunk(I, H, wg.dtype.itemsize)
    ni = I // ti

    grid_spec = pltpu.PrefetchScalarGridSpec(
        num_scalar_prefetch=2,
        grid=(G, ni),
        in_specs=[
            pl.BlockSpec((row_tile, H), lambda g, i, be, bv: (g, 0)),
            pl.BlockSpec((row_tile, 1), lambda g, i, be, bv: (g, 0)),
            pl.BlockSpec((1, H, ti), lambda g, i, be, bv: (be[g], 0, i)),
            pl.BlockSpec((1, H, ti), lambda g, i, be, bv: (be[g], 0, i)),
            pl.BlockSpec((1, ti, H), lambda g, i, be, bv: (be[g], i, 0)),
        ],
        out_specs=pl.BlockSpec((row_tile, H), lambda g, i, be, bv: (g, 0)),
        scratch_shapes=[pltpu.VMEM((row_tile, H), jnp.float32)],
    )
    y_sorted = pl.pallas_call(
        _routed_group_kernel,
        out_shape=jax.ShapeDtypeStruct((cap_rows, H), jnp.float32),
        grid_spec=grid_spec,
        compiler_params=pltpu.CompilerParams(
            dimension_semantics=("parallel", "arbitrary"),
            vmem_limit_bytes=_VMEM_LIMIT),
    )(block_expert, block_valid, x_sorted, w_sorted, wg, wu, wdn)

    # Un-permute / combine (segment-sum in f32); padded rows carry weight 0
    # and contribute exactly zero.
    return jnp.zeros((T, H), jnp.float32).at[row_token].add(y_sorted)


# ----------------------------------------------------------------------------
# Routing (grouped top-k) — plain-JAX glue (top_k / scatter), same as vLLM's
# grouped_topk.  Tiny; no Pallas equivalent needed.
# ----------------------------------------------------------------------------
def grouped_topk(router_logits, top_k, n_group, topk_group, renormalize,
                 scoring_func="softmax", e_score_correction_bias=None):
    T, E = router_logits.shape
    if scoring_func == "softmax":
        scores = jax.nn.softmax(router_logits.astype(jnp.float32), axis=-1)
    elif scoring_func == "sigmoid":
        scores = jax.nn.sigmoid(router_logits.astype(jnp.float32))
    else:
        raise ValueError(scoring_func)

    if e_score_correction_bias is not None:                      # noaux_tc path
        scores_for_choice = scores + e_score_correction_bias[None, :]
        grp = scores_for_choice.reshape(T, n_group, E // n_group)
        top2, _ = jax.lax.top_k(grp, 2)
        group_scores = top2.sum(axis=-1)
    else:
        scores_for_choice = scores
        group_scores = scores.reshape(T, n_group, E // n_group).max(axis=-1)

    _, group_idx = jax.lax.top_k(group_scores, topk_group)       # [T, topk_group]
    group_mask = jnp.zeros((T, n_group), dtype=bool)
    group_mask = group_mask.at[jnp.arange(T)[:, None], group_idx].set(True)
    score_mask = jnp.repeat(group_mask, E // n_group, axis=1)    # [T, E]
    masked = jnp.where(score_mask, scores_for_choice, -jnp.inf)

    if e_score_correction_bias is not None:
        _, topk_ids = jax.lax.top_k(masked, top_k)
        topk_w = jnp.take_along_axis(scores, topk_ids, axis=1)
    else:
        topk_w, topk_ids = jax.lax.top_k(masked, top_k)

    if renormalize:
        topk_w = topk_w / topk_w.sum(axis=-1, keepdims=True)
    return topk_w, topk_ids


# ----------------------------------------------------------------------------
# Full CustomDeepseekV2MoE forward
# ----------------------------------------------------------------------------
def deepseek_v2_moe_forward(hidden_states, params, cfg, *, token_tile=None,
                            row_tile=None):
    T, H = hidden_states.shape
    dtype = hidden_states.dtype
    E = cfg["n_routed_experts"]
    pack = _sublane_pack(dtype)

    # Token tiling for the shared/gate pass.  >=2 tiles when possible so the
    # "parallel" token axis can shard across v7x's two TensorCores; 256 for
    # large (prefill) batches to fill the 256-wide MXU on v6e/v7x.
    if token_tile is None:
        if T <= pack:
            token_tile = pack
        elif T <= 512:
            token_tile = _round_up(-(-T // 2), pack)
        else:
            token_tile = 256
    token_tile = _round_up(max(int(token_tile), pack), pack)
    T_pad = _round_up(T, token_tile)

    x_pad = hidden_states
    if T_pad != T:
        x_pad = jnp.pad(hidden_states, ((0, T_pad - T), (0, 0)))

    # Lane-pad the router gate so the logits output is lane-dense.
    Ep = _round_up(E, 128)
    gate_w = params["gate_w"]
    if Ep != E:
        gate_w = jnp.pad(gate_w, ((0, 0), (0, Ep - E)))

    # Shared-expert MLP fused with the router gate.
    shared_pad, logits_pad = shared_and_gate(
        x_pad, params["shared_w_gate"], params["shared_w_up"],
        params["shared_w_down"], gate_w, token_tile=token_tile)
    shared = shared_pad[:T]
    router_logits = logits_pad[:T, :E]

    # FusedMoE routing (use_grouped_topk=True) — real tokens only.
    topk_w, topk_ids = grouped_topk(
        router_logits,
        top_k=cfg["num_experts_per_tok"],
        n_group=cfg["n_group"],
        topk_group=cfg["topk_group"],
        renormalize=cfg["norm_topk_prob"],
        scoring_func=cfg["scoring_func"],
        e_score_correction_bias=params.get("e_score_correction_bias"),
    )

    # Routed experts as a grouped GEMM; routed_scaling_factor folded into the
    # routing weights inside the kernel.
    routed = routed_experts_grouped(
        hidden_states, params["expert_w_gate"], params["expert_w_up"],
        params["expert_w_down"], topk_w, topk_ids,
        scale=float(cfg["routed_scaling_factor"]), row_tile=row_tile)

    out = (routed + shared.astype(jnp.float32)).astype(dtype)
    return out.reshape(T, H)


# ----------------------------------------------------------------------------
# Pure-JAX reference
# ----------------------------------------------------------------------------
def _reference_forward(hidden_states, params, cfg):
    def mlp(x, wg, wu, wd):
        return (jax.nn.silu(x @ wg) * (x @ wu)) @ wd

    shared = mlp(hidden_states, params["shared_w_gate"],
                 params["shared_w_up"], params["shared_w_down"])
    logits = hidden_states @ params["gate_w"]
    topk_w, topk_ids = grouped_topk(
        logits, cfg["num_experts_per_tok"], cfg["n_group"], cfg["topk_group"],
        cfg["norm_topk_prob"], cfg["scoring_func"],
        params.get("e_score_correction_bias"))
    T = hidden_states.shape[0]
    E = cfg["n_routed_experts"]
    dense_w = jnp.zeros((T, E), jnp.float32)
    dense_w = dense_w.at[jnp.arange(T)[:, None], topk_ids].add(topk_w)
    routed = jnp.zeros(hidden_states.shape, jnp.float32)
    for e in range(E):
        ye = mlp(hidden_states, params["expert_w_gate"][e],
                 params["expert_w_up"][e], params["expert_w_down"][e])
        routed = routed + dense_w[:, e:e + 1] * ye
    return routed * cfg["routed_scaling_factor"] + shared


# ----------------------------------------------------------------------------
# main
# ----------------------------------------------------------------------------
if __name__ == "__main__":
    cfg = dict(
        hidden_size=32,
        n_routed_experts=8,
        num_experts_per_tok=2,
        moe_intermediate_size=16,
        n_shared_experts=1,
        n_group=2,
        topk_group=1,
        norm_topk_prob=True,
        routed_scaling_factor=1.5,
        scoring_func="softmax",
        topk_method="group_limited_greedy",   # -> e_score_correction_bias = None
    )
    H = cfg["hidden_size"]
    E = cfg["n_routed_experts"]
    I = cfg["moe_intermediate_size"]
    shared_I = cfg["moe_intermediate_size"] * cfg["n_shared_experts"]
    T = 12  # num_tokens (not a tile multiple -> exercises padding paths)

    key = jax.random.PRNGKey(0)
    ks = jax.random.split(key, 8)
    params = {
        "gate_w": jax.random.normal(ks[0], (H, E), jnp.float32) * 0.05,
        "shared_w_gate": jax.random.normal(ks[1], (H, shared_I), jnp.float32) * 0.05,
        "shared_w_up": jax.random.normal(ks[2], (H, shared_I), jnp.float32) * 0.05,
        "shared_w_down": jax.random.normal(ks[3], (shared_I, H), jnp.float32) * 0.05,
        "expert_w_gate": jax.random.normal(ks[4], (E, H, I), jnp.float32) * 0.05,
        "expert_w_up": jax.random.normal(ks[5], (E, H, I), jnp.float32) * 0.05,
        "expert_w_down": jax.random.normal(ks[6], (E, I, H), jnp.float32) * 0.05,
    }
    if cfg["topk_method"] == "noaux_tc":
        params["e_score_correction_bias"] = (
            jax.random.normal(ks[7], (E,), jnp.float32) * 0.01)

    hidden_states = jax.random.normal(key, (T, H), jnp.float32)

    # ---- float32 run: strict check vs pure-JAX reference -------------------
    out = deepseek_v2_moe_forward(hidden_states, params, cfg,
                                  token_tile=8, row_tile=8)
    out = jax.block_until_ready(out)
    ref = _reference_forward(hidden_states, params, cfg)
    assert out.shape == (T, H)
    assert jnp.allclose(out, ref, atol=1e-4, rtol=1e-4), "f32 mismatch vs reference"

    # ---- bfloat16 run: halves weight-streaming HBM traffic (smoke check) ---
    params_bf16 = {k: (v.astype(jnp.bfloat16) if k != "e_score_correction_bias"
                       else v) for k, v in params.items()}
    out_bf16 = deepseek_v2_moe_forward(
        hidden_states.astype(jnp.bfloat16), params_bf16, cfg)
    out_bf16 = jax.block_until_ready(out_bf16)
    assert out_bf16.shape == (T, H)
    assert bool(jnp.all(jnp.isfinite(out_bf16.astype(jnp.float32))))
    assert jnp.allclose(out_bf16.astype(jnp.float32), ref, atol=1e-1, rtol=5e-1), \
        "bf16 output grossly off"

    print("KERNEL_OK")
</pallas_src>

<mosaic_0001>
module attributes {stable_mosaic.version = 11 : i64} {
  func.func @_shared_gate_kernel(%arg0: i32, %arg1: i32, %arg2: memref<8x32xf32, #tpu.memory_space<vmem>>, %arg3: memref<32x16xf32, #tpu.memory_space<vmem>>, %arg4: memref<32x16xf32, #tpu.memory_space<vmem>>, %arg5: memref<16x32xf32, #tpu.memory_space<vmem>>, %arg6: memref<32x128xf32, #tpu.memory_space<vmem>>, %arg7: memref<8x32xf32, #tpu.memory_space<vmem>>, %arg8: memref<8x128xf32, #tpu.memory_space<vmem>>, %arg9: memref<8x32xf32, #tpu.memory_space<vmem>>) attributes {dimension_semantics = [#tpu.dimension_semantics<parallel>, #tpu.dimension_semantics<arbitrary>], iteration_bounds = array<i64: 2, 1>, scalar_prefetch = 0 : i64, scratch_operands = 1 : i64, tpu.core_type = #tpu.core_type<tc>, window_params = [{transform_indices = @transform_0, window_bounds = array<i64: 8, 32>}, {transform_indices = @transform_1, window_bounds = array<i64: 32, 16>}, {transform_indices = @transform_2, window_bounds = array<i64: 32, 16>}, {transform_indices = @transform_3, window_bounds = array<i64: 16, 32>}, {pipeline_mode = #tpu.pipeline_mode<synchronous>, transform_indices = @transform_4, window_bounds = array<i64: 32, 128>}, {transform_indices = @transform_5, window_bounds = array<i64: 8, 32>}, {transform_indices = @transform_6, window_bounds = array<i64: 8, 128>}]} {
    %c0 = arith.constant 0 : index
    %c0_0 = arith.constant 0 : index
    %0 = vector.load %arg2[%c0, %c0_0] : memref<8x32xf32, #tpu.memory_space<vmem>>, vector<8x32xf32>
    %c0_i32 = arith.constant 0 : i32
    %1 = arith.cmpi eq, %arg1, %c0_i32 : i32
    %2 = arith.extui %1 : i1 to i32
    %c0_i32_1 = arith.constant 0 : i32
    %3 = arith.cmpi ne, %2, %c0_i32_1 : i32
    scf.if %3 {
      %cst_17 = arith.constant 0.000000e+00 : f32
      %23 = vector.broadcast %cst_17 : f32 to vector<8x32xf32>
      %c0_18 = arith.constant 0 : index
      %c0_19 = arith.constant 0 : index
      %24 = vector.load %arg9[%c0_18, %c0_19] : memref<8x32xf32, #tpu.memory_space<vmem>>, vector<8x32xf32>
      tpu.vector_store %arg9[%c0_18, %c0_19], %23 {strides = array<i32>} : memref<8x32xf32, #tpu.memory_space<vmem>>, vector<8x32xf32>,
      %c0_20 = arith.constant 0 : index
      %c0_21 = arith.constant 0 : index
      %25 = vector.load %arg6[%c0_20, %c0_21] : memref<32x128xf32, #tpu.memory_space<vmem>>, vector<32x128xf32>
      %cst_22 = arith.constant dense<0.000000e+00> : vector<8x128xf32>
      %26 = tpu.matmul %0, %25, %cst_22 {dimension_numbers = #tpu.dot_dimension_numbers<[1], [0], [0], [1], [0, 0, 1, 1], [], []>} : vector<8x32xf32>, vector<32x128xf32>, vector<8x128xf32> -> vector<8x128xf32>
      %c0_23 = arith.constant 0 : index
      %c0_24 = arith.constant 0 : index
      %27 = vector.load %arg8[%c0_23, %c0_24] : memref<8x128xf32, #tpu.memory_space<vmem>>, vector<8x128xf32>
      tpu.vector_store %arg8[%c0_23, %c0_24], %26 {strides = array<i32>} : memref<8x128xf32, #tpu.memory_space<vmem>>, vector<8x128xf32>,
    } else {
    }
    %c0_2 = arith.constant 0 : index
    %c0_3 = arith.constant 0 : index
    %4 = vector.load %arg3[%c0_2, %c0_3] : memref<32x16xf32, #tpu.memory_space<vmem>>, vector<32x16xf32>
    %cst = arith.constant dense<0.000000e+00> : vector<8x16xf32>
    %5 = tpu.matmul %0, %4, %cst {dimension_numbers = #tpu.dot_dimension_numbers<[1], [0], [0], [1], [0, 0, 1, 1], [], []>} : vector<8x32xf32>, vector<32x16xf32>, vector<8x16xf32> -> vector<8x16xf32>
    %c0_4 = arith.constant 0 : index
    %c0_5 = arith.constant 0 : index
    %6 = vector.load %arg4[%c0_4, %c0_5] : memref<32x16xf32, #tpu.memory_space<vmem>>, vector<32x16xf32>
    %cst_6 = arith.constant dense<0.000000e+00> : vector<8x16xf32>
    %7 = tpu.matmul %0, %6, %cst_6 {dimension_numbers = #tpu.dot_dimension_numbers<[1], [0], [0], [1], [0, 0, 1, 1], [], []>} : vector<8x32xf32>, vector<32x16xf32>, vector<8x16xf32> -> vector<8x16xf32>
    %8 = arith.negf %5 : vector<8x16xf32>
    %9 = math.exp %8 : vector<8x16xf32>
    %cst_7 = arith.constant 1.000000e+00 : f32
    %10 = vector.broadcast %cst_7 : f32 to vector<8x16xf32>
    %11 = arith.addf %10, %9 : vector<8x16xf32>
    %12 = arith.divf %10, %11 : vector<8x16xf32>
    %13 = arith.mulf %5, %12 : vector<8x16xf32>
    %14 = arith.mulf %13, %7 : vector<8x16xf32>
    %c0_8 = arith.constant 0 : index
    %c0_9 = arith.constant 0 : index
    %15 = vector.load %arg9[%c0_8, %c0_9] : memref<8x32xf32, #tpu.memory_space<vmem>>, vector<8x32xf32>
    %c0_10 = arith.constant 0 : index
    %c0_11 = arith.constant 0 : index
    %16 = vector.load %arg5[%c0_10, %c0_11] : memref<16x32xf32, #tpu.memory_space<vmem>>, vector<16x32xf32>
    %cst_12 = arith.constant dense<0.000000e+00> : vector<8x32xf32>
    %17 = tpu.matmul %14, %16, %cst_12 {dimension_numbers = #tpu.dot_dimension_numbers<[1], [0], [0], [1], [0, 0, 1, 1], [], []>} : vector<8x16xf32>, vector<16x32xf32>, vector<8x32xf32> -> vector<8x32xf32>
    %18 = arith.addf %15, %17 : vector<8x32xf32>
    %c0_13 = arith.constant 0 : index
    %c0_14 = arith.constant 0 : index
    %19 = vector.load %arg9[%c0_13, %c0_14] : memref<8x32xf32, #tpu.memory_space<vmem>>, vector<8x32xf32>
    tpu.vector_store %arg9[%c0_13, %c0_14], %18 {strides = array<i32>} : memref<8x32xf32, #tpu.memory_space<vmem>>, vector<8x32xf32>,
    %c0_i32_15 = arith.constant 0 : i32
    %20 = arith.cmpi eq, %arg1, %c0_i32_15 : i32
    %21 = arith.extui %20 : i1 to i32
    %c0_i32_16 = arith.constant 0 : i32
    %22 = arith.cmpi ne, %21, %c0_i32_16 : i32
    scf.if %22 {
      %c0_17 = arith.constant 0 : index
      %c0_18 = arith.constant 0 : index
      %23 = vector.load %arg9[%c0_17, %c0_18] : memref<8x32xf32, #tpu.memory_space<vmem>>, vector<8x32xf32>
      %c0_19 = arith.constant 0 : index
      %c0_20 = arith.constant 0 : index
      %24 = vector.load %arg7[%c0_19, %c0_20] : memref<8x32xf32, #tpu.memory_space<vmem>>, vector<8x32xf32>
      tpu.vector_store %arg7[%c0_19, %c0_20], %23 {strides = array<i32>} : memref<8x32xf32, #tpu.memory_space<vmem>>, vector<8x32xf32>,
    } else {
    }
    return
  }
  func.func @transform_0(%arg0: i32, %arg1: i32) -> (i32, i32) {
    %c0_i32 = arith.constant 0 : i32
    %c0_i32_0 = arith.constant 0 : i32
    return %arg0, %c0_i32 : i32, i32
  }
  func.func @transform_1(%arg0: i32, %arg1: i32) -> (i32, i32) {
    %c0_i32 = arith.constant 0 : i32
    %c0_i32_0 = arith.constant 0 : i32
    return %c0_i32, %arg1 : i32, i32
  }
  func.func @transform_2(%arg0: i32, %arg1: i32) -> (i32, i32) {
    %c0_i32 = arith.constant 0 : i32
    %c0_i32_0 = arith.constant 0 : i32
    return %c0_i32, %arg1 : i32, i32
  }
  func.func @transform_3(%arg0: i32, %arg1: i32) -> (i32, i32) {
    %c0_i32 = arith.constant 0 : i32
    %c0_i32_0 = arith.constant 0 : i32
    return %arg1, %c0_i32 : i32, i32
  }
  func.func @transform_4(%arg0: i32, %arg1: i32) -> (i32, i32) {
    %c0_i32 = arith.constant 0 : i32
    %c0_i32_0 = arith.constant 0 : i32
    %c0_i32_1 = arith.constant 0 : i32
    return %c0_i32, %c0_i32_0 : i32, i32
  }
  func.func @transform_5(%arg0: i32, %arg1: i32) -> (i32, i32) {
    %c0_i32 = arith.constant 0 : i32
    %c0_i32_0 = arith.constant 0 : i32
    return %arg0, %c0_i32 : i32, i32
  }
  func.func @transform_6(%arg0: i32, %arg1: i32) -> (i32, i32) {
    %c0_i32 = arith.constant 0 : i32
    %c0_i32_0 = arith.constant 0 : i32
    return %arg0, %c0_i32 : i32, i32
  }
}

</mosaic_0001>

<llo_original>
// kernel: tpu_custom_call.1
$region0: #{tpu_custom_call.1}
  #allocation0 [shape = 'u32[]', space=smem, size = 0x4, offset = 0x4, fixed_abs, tag = 'smem constant byte address 0x4 - core index']
  #allocation1 [shape = 'u32[144,128]{1,0:T(1,128)}', space=vmem, size = 0x12000, scoped, tag = 'internal scratch']
  #allocation2 [shape = 'f32[8,32]{1,0:T(8,128)}', space=vmem, size = 0x1000, scoped, tag = 'scratch operand']
  %s0 = inlined_call_operand.vmem [shape: f32[16,32], index: 0, kind: input, shape index: {}]
  %s1 = inlined_call_operand.vmem [shape: f32[32,16], index: 1, kind: input, shape index: {}]
  %s2 = inlined_call_operand.vmem [shape: f32[32,16], index: 2, kind: input, shape index: {}]
  %s3 = inlined_call_operand.vmem [shape: f32[16,32], index: 3, kind: input, shape index: {}]
  %s4 = inlined_call_operand.vmem [shape: f32[32,128], index: 4, kind: input, shape index: {}]
  %s5 = inlined_call_operand.hbm [shape: f32[16,32], index: 5, kind: output, shape index: {0}]
  %s6 = inlined_call_operand.hbm [shape: f32[16,128], index: 6, kind: output, shape index: {1}]
  %7 = xla_tuple %s5, %s6
  %s8 = sld [smem:[#allocation0]]
  $region69: #{tpu_custom_call.1} parent=0
    _
  %s10 = ssub.s32 1, %s8
  %s11 = scalar_select 0, %s10, %s8
  $region1: #{tpu_custom_call.1} parent=0
    #allocation3 [shape = 'u8[8192]{0}', space=vmem, size = 0x2000, scoped, tag = 'output window, operand 0']
    #allocation4 [shape = 's32[2]{0}', space=sflag, size = 0x8, scoped, tag = 'scoped memory for tpu_custom_call.1']
    #allocation5 [shape = 'u8[8192]{0}', space=vmem, size = 0x2000, scoped, tag = 'output window, operand 1']
    #allocation6 [shape = 's32[2]{0}', space=sflag, size = 0x8, scoped, tag = 'scoped memory for tpu_custom_call.1']
    %12 = vsyncpa [#allocation4], 0
    %s13 = scalar_lea.sflag [#allocation4], 1
    %14 = vsyncpa %s13, 0
    %15 = vsyncpa [#allocation6], 0
    %s16 = scalar_lea.sflag [#allocation6], 1
    %17 = vsyncpa %s16, 0
    loop: start=0, step=1, limit=4
    $region2: #{tpu_custom_call.1} parent=1 // loop_pre_header
      _
    $region3: #{tpu_custom_call.1} parent=1 // loop_header
      %s19 = sphi 0, %s23
      %p20 = scmp.ge.s32.totalorder %s19, 4
      %s26 = sphi 0, %s38
      %s27 = sphi 0, %s34
      %s28 = sphi 0, %s26
      %s29 = sphi 0, %s27
      %s30 = sphi 0, %s28
      %s31 = sphi 0, %s29
      %s41 = sphi 0, %s43
      %s44 = sphi 0, %s41
      %s45 = sphi 0, %s44
      %s61 = sphi 0, %s45
      %s67 = sphi 0, %s69
      %s70 = sphi 0, %s67
      %s71 = sphi 0, %s70
      %s87 = sphi 0, %s71
      %s93 = sphi 0, %s95
      %s96 = sphi 0, %s93
      %s97 = sphi 0, %s96
      %s113 = sphi 0, %s97
      %s119 = sphi 0, %s121
      %s122 = sphi 0, %s119
      %s123 = sphi 0, %s122
      %s139 = sphi 0, %s123
      %s143 = sphi 0, %s143
      %s145 = sphi 0, %s143
      %s146 = sphi 0, %s145
      %s160 = sphi 0, %s146
      %s166 = sphi 0, %s168
      %s169 = sphi 0, %s166
      %s170 = sphi 0, %s169
      %s186 = sphi 0, %s170
      %s192 = sphi 0, %s194
      %s195 = sphi 0, %s192
      %s196 = sphi 0, %s195
      %s212 = sphi 0, %s196
    $region4: #{tpu_custom_call.1} parent=1 // loop_header_branch
      %22 = sbr.rel (%p20) target = $region8
    $region5: #{tpu_custom_call.1} parent=1 // loop_body
      %s24 = ssub.s32 %s19, 1
      %s25 = ssub.s32 %s19, 2
      %s32 = sadd.s32 1, %s27
      %p33 = scmp.ge.s32.totalorder %s32, 1
      %s34 = scalar_select %p33, 0, %s32
      %s35 = sadd.s32 1, %s26
      %s36 = scalar_select %p33, %s35, %s26
      %p37 = scmp.ge.s32.totalorder %s36, 2
      %s38 = scalar_select %p37, 0, %s36
      %s39 = ssub.s32 %s26, %s38
      %p40 = scmp.eq.s32.totalorder %s39, 0
      %s42 = sadd.s32 %s41, 1
      %s43 = scalar_select %p40, %s41, %s42
      %p46 = pneg %p40
      %p47 = scmp.eq.s32.totalorder %s19, 1
      %p48 = por %p46, %p47
      %p49 = scmp.ne.s32.totalorder %s41, %s44
      %p50 = scmp.eq.s32.totalorder %s19, 0
      %p51 = por %p49, %p50
      %p52 = scmp.ne.s32.totalorder %s41, %s44
      %p53 = scmp.eq.s32.totalorder %s24, 1
      %p54 = por %p52, %p53
      %p55 = scmp.ne.s32.totalorder %s44, %s45
      %p56 = scmp.eq.s32.totalorder %s24, 0
      %p57 = por %p55, %p56
      %p58 = scmp.ne.s32.totalorder %s44, %s45
      %p59 = scmp.eq.s32.totalorder %s25, 1
      %p60 = por %p58, %p59
      %p62 = scmp.ne.s32.totalorder %s45, %s61
      %p63 = scmp.eq.s32.totalorder %s25, 0
      %p64 = por %p62, %p63
      %s65 = ssub.s32 %s27, %s34
      %p66 = scmp.eq.s32.totalorder %s65, 0
      %s68 = sadd.s32 %s67, 1
      %s69 = scalar_select %p66, %s67, %s68
      %p72 = pneg %p66
      %p73 = scmp.eq.s32.totalorder %s19, 1
      %p74 = por %p72, %p73
      %p75 = scmp.ne.s32.totalorder %s67, %s70
      %p76 = scmp.eq.s32.totalorder %s19, 0
      %p77 = por %p75, %p76
      %p78 = scmp.ne.s32.totalorder %s67, %s70
      %p79 = scmp.eq.s32.totalorder %s24, 1
      %p80 = por %p78, %p79
      %p81 = scmp.ne.s32.totalorder %s70, %s71
      %p82 = scmp.eq.s32.totalorder %s24, 0
      %p83 = por %p81, %p82
      %p84 = scmp.ne.s32.totalorder %s70, %s71
      %p85 = scmp.eq.s32.totalorder %s25, 1
      %p86 = por %p84, %p85
      %p88 = scmp.ne.s32.totalorder %s71, %s87
      %p89 = scmp.eq.s32.totalorder %s25, 0
      %p90 = por %p88, %p89
      %s91 = ssub.s32 %s27, %s34
      %p92 = scmp.eq.s32.totalorder %s91, 0
      %s94 = sadd.s32 %s93, 1
      %s95 = scalar_select %p92, %s93, %s94
      %p98 = pneg %p92
      %p99 = scmp.eq.s32.totalorder %s19, 1
      %p100 = por %p98, %p99
      %p101 = scmp.ne.s32.totalorder %s93, %s96
      %p102 = scmp.eq.s32.totalorder %s19, 0
      %p103 = por %p101, %p102
      %p104 = scmp.ne.s32.totalorder %s93, %s96
      %p105 = scmp.eq.s32.totalorder %s24, 1
      %p106 = por %p104, %p105
      %p107 = scmp.ne.s32.totalorder %s96, %s97
      %p108 = scmp.eq.s32.totalorder %s24, 0
      %p109 = por %p107, %p108
      %p110 = scmp.ne.s32.totalorder %s96, %s97
      %p111 = scmp.eq.s32.totalorder %s25, 1
      %p112 = por %p110, %p111
      %p114 = scmp.ne.s32.totalorder %s97, %s113
      %p115 = scmp.eq.s32.totalorder %s25, 0
      %p116 = por %p114, %p115
      %s117 = ssub.s32 %s27, %s34
      %p118 = scmp.eq.s32.totalorder %s117, 0
      %s120 = sadd.s32 %s119, 1
      %s121 = scalar_select %p118, %s119, %s120
      %p124 = pneg %p118
      %p125 = scmp.eq.s32.totalorder %s19, 1
      %p126 = por %p124, %p125
      %p127 = scmp.ne.s32.totalorder %s119, %s122
      %p128 = scmp.eq.s32.totalorder %s19, 0
      %p129 = por %p127, %p128
      %p130 = scmp.ne.s32.totalorder %s119, %s122
      %p131 = scmp.eq.s32.totalorder %s24, 1
      %p132 = por %p130, %p131
      %p133 = scmp.ne.s32.totalorder %s122, %s123
      %p134 = scmp.eq.s32.totalorder %s24, 0
      %p135 = por %p133, %p134
      %p136 = scmp.ne.s32.totalorder %s122, %s123
      %p137 = scmp.eq.s32.totalorder %s25, 1
      %p138 = por %p136, %p137
      %p140 = scmp.ne.s32.totalorder %s123, %s139
      %p141 = scmp.eq.s32.totalorder %s25, 0
      %p142 = por %p140, %p141
      %s144 = sadd.s32 %s143, 1
      %p147 = scmp.eq.s32.totalorder %s19, 1
      %p148 = scmp.ne.s32.totalorder %s143, %s145
      %p149 = scmp.eq.s32.totalorder %s19, 0
      %p150 = por %p148, %p149
      %p151 = scmp.ne.s32.totalorder %s143, %s145
      %p152 = scmp.eq.s32.totalorder %s24, 1
      %p153 = por %p151, %p152
      %p154 = scmp.ne.s32.totalorder %s145, %s146
      %p155 = scmp.eq.s32.totalorder %s24, 0
      %p156 = por %p154, %p155
      %p157 = scmp.ne.s32.totalorder %s145, %s146
      %p158 = scmp.eq.s32.totalorder %s25, 1
      %p159 = por %p157, %p158
      %p161 = scmp.ne.s32.totalorder %s146, %s160
      %p162 = scmp.eq.s32.totalorder %s25, 0
      %p163 = por %p161, %p162
      %s164 = ssub.s32 %s26, %s38
      %p165 = scmp.eq.s32.totalorder %s164, 0
      %s167 = sadd.s32 %s166, 1
      %s168 = scalar_select %p165, %s166, %s167
      %p171 = pneg %p165
      %p172 = scmp.eq.s32.totalorder %s19, 1
      %p173 = por %p171, %p172
      %p174 = scmp.ne.s32.totalorder %s166, %s169
      %p175 = scmp.eq.s32.totalorder %s19, 0
      %p176 = por %p174, %p175
      %p177 = scmp.ne.s32.totalorder %s166, %s169
      %p178 = scmp.eq.s32.totalorder %s24, 1
      %p179 = por %p177, %p178
      %p180 = scmp.ne.s32.totalorder %s169, %s170
      %p181 = scmp.eq.s32.totalorder %s24, 0
      %p182 = por %p180, %p181
      %p183 = scmp.ne.s32.totalorder %s169, %s170
      %p184 = scmp.eq.s32.totalorder %s25, 1
      %p185 = por %p183, %p184
      %p187 = scmp.ne.s32.totalorder %s170, %s186
      %p188 = scmp.eq.s32.totalorder %s25, 0
      %p189 = por %p187, %p188
      %s190 = ssub.s32 %s26, %s38
      %p191 = scmp.eq.s32.totalorder %s190, 0
      %s193 = sadd.s32 %s192, 1
      %s194 = scalar_select %p191, %s192, %s193
      %p197 = pneg %p191
      %p198 = scmp.eq.s32.totalorder %s19, 1
      %p199 = por %p197, %p198
      %p200 = scmp.ne.s32.totalorder %s192, %s195
      %p201 = scmp.eq.s32.totalorder %s19, 0
      %p202 = por %p200, %p201
      %p203 = scmp.ne.s32.totalorder %s192, %s195
      %p204 = scmp.eq.s32.totalorder %s24, 1
      %p205 = por %p203, %p204
      %p206 = scmp.ne.s32.totalorder %s195, %s196
      %p207 = scmp.eq.s32.totalorder %s24, 0
      %p208 = por %p206, %p207
      %p209 = scmp.ne.s32.totalorder %s195, %s196
      %p210 = scmp.eq.s32.totalorder %s25, 1
      %p211 = por %p209, %p210
      %p213 = scmp.ne.s32.totalorder %s196, %s212
      %p214 = scmp.eq.s32.totalorder %s25, 0
      %p215 = por %p213, %p214
      %p216 = scmp.le.s32.totalorder 1, %s19
      %p217 = scmp.lt.s32.totalorder %s19, 3
      %p218 = pnand %p216, %p217
      %p219 = pneg %p218
      // Predicated region
      $region9: #{tpu_custom_call.1} parent=5 // pred_check
        _
      $region10: #{tpu_custom_call.1} parent=5 // pred_check_branch
        %221 = sbr.rel (%p218) target = $region12
      $region11: #{tpu_custom_call.1} parent=5 // pred_region
        %s222 = ssub.s32 %s19, 1
        // Predicated region
        $region13: #{tpu_custom_call.1} parent=11 // pred_check
          %p223 = pneg %p83
        $region14: #{tpu_custom_call.1} parent=11 // pred_check_branch
          %225 = sbr.rel (%p223) target = $region16
        $region15: #{tpu_custom_call.1} parent=11 // pred_region
          %p226 = scmp.lt.s32.totalorder %s29, 0
          %s227 = scalar_select %p226, %s29, 0
          %s228 = smul.addr %s227, 8
          %s229 = scalar_lea.vmem %s1, %s228
        $region16: #{tpu_custom_call.1} parent=11 // pred_fallthru
          _
        // Predicated region
        $region17: #{tpu_custom_call.1} parent=11 // pred_check
          %p230 = pneg %p109
        $region18: #{tpu_custom_call.1} parent=11 // pred_check_branch
          %232 = sbr.rel (%p230) target = $region20
        $region19: #{tpu_custom_call.1} parent=11 // pred_region
          %p233 = scmp.lt.s32.totalorder %s29, 0
          %s234 = scalar_select %p233, %s29, 0
          %s235 = smul.addr %s234, 8
          %s236 = scalar_lea.vmem %s2, %s235
        $region20: #{tpu_custom_call.1} parent=11 // pred_fallthru
          _
        // Predicated region
        $region21: #{tpu_custom_call.1} parent=11 // pred_check
          %p237 = pneg %p135
        $region22: #{tpu_custom_call.1} parent=11 // pred_check_branch
          %239 = sbr.rel (%p237) target = $region24
        $region23: #{tpu_custom_call.1} parent=11 // pred_region
          %s240 = smul.u32 2, %s29
          %p241 = scmp.lt.s32.totalorder %s240, 1
          %s242 = scalar_select %p241, %s240, 1
          %s243 = smul.addr %s242, 8
          %s244 = scalar_lea.vmem %s3, %s243
          %s245 = smul.u32 2, %s29
        $region24: #{tpu_custom_call.1} parent=11 // pred_fallthru
          _
        // Predicated region
        $region25: #{tpu_custom_call.1} parent=11 // pred_check
          %p246 = pneg %p156
        $region26: #{tpu_custom_call.1} parent=11 // pred_check_branch
          %248 = sbr.rel (%p246) target = $region28
        $region27: #{tpu_custom_call.1} parent=11 // pred_region
          _
        $region28: #{tpu_custom_call.1} parent=11 // pred_fallthru
          _
      $region12: #{tpu_custom_call.1} parent=5 // pred_fallthru
        _
      %p249 = scmp.lt.s32.totalorder %s19, 2
      // Predicated region
      $region29: #{tpu_custom_call.1} parent=5 // pred_check
        %p250 = pneg %p249
      $region30: #{tpu_custom_call.1} parent=5 // pred_check_branch
        %252 = sbr.rel (%p250) target = $region32
      $region31: #{tpu_custom_call.1} parent=5 // pred_region
        // Predicated region
        $region33: #{tpu_custom_call.1} parent=31 // pred_check
          %p253 = pneg %p51
        $region34: #{tpu_custom_call.1} parent=31 // pred_check_branch
          %255 = sbr.rel (%p253) target = $region36
        $region35: #{tpu_custom_call.1} parent=31 // pred_region
          %p256 = scmp.lt.s32.totalorder %s26, 1
          %s257 = scalar_select %p256, %s26, 1
          %s258 = smul.addr %s257, 8
          %s259 = scalar_lea.vmem %s0, %s258
        $region36: #{tpu_custom_call.1} parent=31 // pred_fallthru
          _
      $region32: #{tpu_custom_call.1} parent=5 // pred_fallthru
        _
      %p260 = scmp.le.s32.totalorder 1, %s19
      %p261 = scmp.lt.s32.totalorder %s19, 3
      %p262 = pnand %p260, %p261
      %p263 = pneg %p262
      // Predicated region
      $region37: #{tpu_custom_call.1} parent=5 // pred_check
        _
      $region38: #{tpu_custom_call.1} parent=5 // pred_check_branch
        %265 = sbr.rel (%p262) target = $region40
      $region39: #{tpu_custom_call.1} parent=5 // pred_region
        %s266 = ssub.s32 %s19, 1
        %p267 = scmp.lt.s32.totalorder %s28, 1
        %s268 = scalar_select %p267, %s28, 1
        %s269 = smul.addr %s268, 8
        %s270 = scalar_lea.vmem %s0, %s269
        %p271 = pneg %p57
        %p272 = pneg %p54
        %p273 = scmp.lt.s32.totalorder %s29, 0
        %s274 = scalar_select %p273, %s29, 0
        %s275 = smul.addr %s274, 8
        %s276 = scalar_lea.vmem %s1, %s275
        %p277 = pneg %p83
        %p278 = pneg %p80
        %p279 = scmp.lt.s32.totalorder %s29, 0
        %s280 = scalar_select %p279, %s29, 0
        %s281 = smul.addr %s280, 8
        %s282 = scalar_lea.vmem %s2, %s281
        %p283 = pneg %p109
        %p284 = pneg %p106
        %s285 = smul.u32 2, %s29
        %p286 = scmp.lt.s32.totalorder %s285, 1
        %s287 = scalar_select %p286, %s285, 1
        %s288 = smul.addr %s287, 8
        %s289 = scalar_lea.vmem %s3, %s288
        %p290 = pneg %p135
        %p291 = pneg %p132
        %p292 = pneg %p156
        %p293 = pneg %p153
        %p294 = pneg %p182
        %p295 = pneg %p179
        %s296 = sand.u32 %s169, 1
        %s297 = scalar_lea.sflag [#allocation4], %s296
        %s298 = sand.u32 %s169, 1
        %s299 = smul.addr %s298, 8
        %s300 = scalar_lea.vmem [#allocation3], %s299
        %p301 = pneg %p208
        %p302 = pneg %p205
        %s303 = sand.u32 %s195, 1
        %s304 = scalar_lea.sflag [#allocation6], %s303
        %s305 = sand.u32 %s195, 1
        %s306 = smul.addr %s305, 8
        %s307 = scalar_lea.vmem [#allocation5], %s306
        %p308 = scmp.lt.s32.totalorder %s28, 1
        %s309 = scalar_select %p308, %s28, 1
        %s310 = smul.addr %s309, 8
        %s311 = scalar_lea.vmem %s0, %s310
        %p312 = scmp.lt.s32.totalorder %s29, 0
        %s313 = scalar_select %p312, %s29, 0
        %s314 = smul.addr %s313, 8
        %s315 = scalar_lea.vmem %s1, %s314
        %p316 = scmp.lt.s32.totalorder %s29, 0
        %s317 = scalar_select %p316, %s29, 0
        %s318 = smul.addr %s317, 8
        %s319 = scalar_lea.vmem %s2, %s318
        %s320 = smul.u32 2, %s29
        %p321 = scmp.lt.s32.totalorder %s320, 1
        %s322 = scalar_select %p321, %s320, 1
        %s323 = smul.addr %s322, 8
        %s324 = scalar_lea.vmem %s3, %s323
        %s325 = smul.u32 2, %s29
        %v326 = vld [vmem:[%s311] sm:$0xff]
        %p327 = scmp.eq.s32.totalorder %s29, 0
        // Predicated region
        $region41: #{tpu_custom_call.1} parent=39 // pred_check
          %p328 = pneg %p327
        $region42: #{tpu_custom_call.1} parent=39 // pred_check_branch
          %330 = sbr.rel (%p328) target = $region44
        $region43: #{tpu_custom_call.1} parent=39 // pred_region
          %vm331 = vcmask 261120
          %332 = vst.msk [vmem:[#allocation2] sm:$0xff] %vm331, 0.0
          %v333 = vld [vmem:[%s4] sm:$0xff]
          %v334 = vld [vmem:[%s4 + $0x8] sm:$0xff]
          %v335 = vld [vmem:[%s4 + $0x10] sm:$0xff]
          %v336 = vld [vmem:[%s4 + $0x18] sm:$0xff]
          %v338 = vsel %vm331, %v326, 0
          %340 = vmatprep.subr.mxu0 0.0
          %341 = vmatpush1.msra.mxu0 0.0
          %342 = vmatprep.subr.mxu0 0.0
          %343 = vmatpush1.msra.mxu0 0.0
          %344 = vmatprep.subr.mxu0 0.0
          %345 = vmatpush1.msra.mxu0 0.0
          %346 = vmatprep.subr.mxu0 0.0
          %347 = vmatpush1.msra.mxu0 0.0
          %348 = vmatprep.subr.mxu0 0.0
          %349 = vmatpush1.msra.mxu0 0.0
          %350 = vmatprep.subr.mxu0 0.0
          %351 = vmatpush1.msra.mxu0 0.0
          %352 = vmatprep.subr.mxu0 0.0
          %353 = vmatpush1.msra.mxu0 0.0
          %354 = vmatprep.subr.mxu0 0.0
          %355 = vmatpush1.msra.mxu0 0.0
          %356 = vmatprep.subr.mxu0 0.0
          %357 = vmatpush1.msra.mxu0 0.0
          %358 = vmatprep.subr.mxu0 0.0
          %359 = vmatpush1.msra.mxu0 0.0
          %360 = vmatprep.subr.mxu0 0.0
          %361 = vmatpush1.msra.mxu0 0.0
          %362 = vmatprep.subr.mxu0 0.0
          %363 = vmatpush1.msra.mxu0 0.0
          %364 = vmatprep.subr.mxu0 0.0
          %365 = vmatpush1.msra.mxu0 %v336
          %366 = vmatprep.subr.mxu0 0.0
          %367 = vmatpush1.msra.mxu0 %v335
          %368 = vmatprep.subr.mxu0 0.0
          %369 = vmatpush1.msra.mxu0 %v334
          %370 = vmatprep.subr.mxu0 0.0
          %371 = vmatpush1.msra.mxu0 %v333
          %372 = vmatprep.subr.mxu0 0.0
          %373 = vmatpush2.msra.mxu0 0.0
          %374 = vmatprep.subr.mxu0 0.0
          %375 = vmatpush2.msra.mxu0 0.0
          %376 = vmatprep.subr.mxu0 0.0
          %377 = vmatpush2.msra.mxu0 0.0
          %378 = vmatprep.subr.mxu0 0.0
          %379 = vmatpush2.msra.mxu0 0.0
          %380 = vmatprep.subr.mxu0 0.0
          %381 = vmatpush2.msra.mxu0 0.0
          %382 = vmatprep.subr.mxu0 0.0
          %383 = vmatpush2.msra.mxu0 0.0
          %384 = vmatprep.subr.mxu0 0.0
          %385 = vmatpush2.msra.mxu0 0.0
          %386 = vmatprep.subr.mxu0 0.0
          %387 = vmatpush2.msra.mxu0 0.0
          %388 = vmatprep.subr.mxu0 0.0
          %389 = vmatpush2.msra.mxu0 0.0
          %390 = vmatprep.subr.mxu0 0.0
          %391 = vmatpush2.msra.mxu0 0.0
          %392 = vmatprep.subr.mxu0 0.0
          %393 = vmatpush2.msra.mxu0 0.0
          %394 = vmatprep.subr.mxu0 0.0
          %395 = vmatpush2.msra.mxu0 0.0
          %396 = vmatprep.subr.mxu0 0.0
          %397 = vmatpush2.msra.mxu0 0.0
          %398 = vmatprep.subr.mxu0 0.0
          %399 = vmatpush2.msra.mxu0 0.0
          %400 = vmatprep.subr.mxu0 0.0
          %401 = vmatpush2.msra.mxu0 0.0
          %402 = vmatprep.subr.mxu0 0.0
          %403 = vmatpush2.msra.mxu0 0.0
          %404 = vmatprep.mubr.f32.mxu0 0.0
          %405 = vmatmul.mubr.f32.gmra.mxu0 %v338
          %v406 = vpop.f32.mrf.mxu0
          %v407 = vadd.f32 0.0, %v406
          %v408 = vpop.f32.mrf.mxu0
          %409 = vdwg.mxu0
          %410 = vst [vmem:[%s307] sm:$0xff] %v407
        $region44: #{tpu_custom_call.1} parent=39 // pred_fallthru
          _
        %v411 = vld [vmem:[%s315] sm:$0xff]
        %v412 = vld [vmem:[%s315 + $0x8] sm:$0xff]
        %v413 = vld [vmem:[%s315 + $0x10] sm:$0xff]
        %v414 = vld [vmem:[%s315 + $0x18] sm:$0xff]
        %vm415 = vcmask 261120
        %v417 = vsel %vm415, %v326, 0
        %419 = vmatprep.subr.mxu0 0.0
        %420 = vmatpush1.msra.mxu0 0.0
        %421 = vmatprep.subr.mxu0 0.0
        %422 = vmatpush1.msra.mxu0 0.0
        %423 = vmatprep.subr.mxu0 0.0
        %424 = vmatpush1.msra.mxu0 0.0
        %425 = vmatprep.subr.mxu0 0.0
        %426 = vmatpush1.msra.mxu0 0.0
        %427 = vmatprep.subr.mxu0 0.0
        %428 = vmatpush1.msra.mxu0 0.0
        %429 = vmatprep.subr.mxu0 0.0
        %430 = vmatpush1.msra.mxu0 0.0
        %431 = vmatprep.subr.mxu0 0.0
        %432 = vmatpush1.msra.mxu0 0.0
        %433 = vmatprep.subr.mxu0 0.0
        %434 = vmatpush1.msra.mxu0 0.0
        %435 = vmatprep.subr.mxu0 0.0
        %436 = vmatpush1.msra.mxu0 0.0
        %437 = vmatprep.subr.mxu0 0.0
        %438 = vmatpush1.msra.mxu0 0.0
        %439 = vmatprep.subr.mxu0 0.0
        %440 = vmatpush1.msra.mxu0 0.0
        %441 = vmatprep.subr.mxu0 0.0
        %442 = vmatpush1.msra.mxu0 0.0
        %443 = vmatprep.subr.mxu0 0.0
        %444 = vmatpush1.msra.mxu0 %v414
        %445 = vmatprep.subr.mxu0 0.0
        %446 = vmatpush1.msra.mxu0 %v413
        %447 = vmatprep.subr.mxu0 0.0
        %448 = vmatpush1.msra.mxu0 %v412
        %449 = vmatprep.subr.mxu0 0.0
        %450 = vmatpush1.msra.mxu0 %v411
        %451 = vmatprep.subr.mxu0 0.0
        %452 = vmatpush2.msra.mxu0 0.0
        %453 = vmatprep.subr.mxu0 0.0
        %454 = vmatpush2.msra.mxu0 0.0
        %455 = vmatprep.subr.mxu0 0.0
        %456 = vmatpush2.msra.mxu0 0.0
        %457 = vmatprep.subr.mxu0 0.0
        %458 = vmatpush2.msra.mxu0 0.0
        %459 = vmatprep.subr.mxu0 0.0
        %460 = vmatpush2.msra.mxu0 0.0
        %461 = vmatprep.subr.mxu0 0.0
        %462 = vmatpush2.msra.mxu0 0.0
        %463 = vmatprep.subr.mxu0 0.0
        %464 = vmatpush2.msra.mxu0 0.0
        %465 = vmatprep.subr.mxu0 0.0
        %466 = vmatpush2.msra.mxu0 0.0
        %467 = vmatprep.subr.mxu0 0.0
        %468 = vmatpush2.msra.mxu0 0.0
        %469 = vmatprep.subr.mxu0 0.0
        %470 = vmatpush2.msra.mxu0 0.0
        %471 = vmatprep.subr.mxu0 0.0
        %472 = vmatpush2.msra.mxu0 0.0
        %473 = vmatprep.subr.mxu0 0.0
        %474 = vmatpush2.msra.mxu0 0.0
        %475 = vmatprep.subr.mxu0 0.0
        %476 = vmatpush2.msra.mxu0 0.0
        %477 = vmatprep.subr.mxu0 0.0
        %478 = vmatpush2.msra.mxu0 0.0
        %479 = vmatprep.subr.mxu0 0.0
        %480 = vmatpush2.msra.mxu0 0.0
        %481 = vmatprep.subr.mxu0 0.0
        %482 = vmatpush2.msra.mxu0 0.0
        %483 = vmatprep.mubr.f32.mxu0 0.0
        %484 = vmatmul.mubr.f32.gmra.mxu0 %v417
        %v485 = vpop.f32.mrf.mxu0
        %v486 = vadd.f32 0.0, %v485
        %v487 = vpop.f32.mrf.mxu0
        %488 = vdwg.mxu0
        %v489 = vld [vmem:[%s319] sm:$0xff]
        %v490 = vld [vmem:[%s319 + $0x8] sm:$0xff]
        %v491 = vld [vmem:[%s319 + $0x10] sm:$0xff]
        %v492 = vld [vmem:[%s319 + $0x18] sm:$0xff]
        %493 = vmatprep.subr.mxu0 0.0
        %494 = vmatpush1.msra.mxu0 0.0
        %495 = vmatprep.subr.mxu0 0.0
        %496 = vmatpush1.msra.mxu0 0.0
        %497 = vmatprep.subr.mxu0 0.0
        %498 = vmatpush1.msra.mxu0 0.0
        %499 = vmatprep.subr.mxu0 0.0
        %500 = vmatpush1.msra.mxu0 0.0
        %501 = vmatprep.subr.mxu0 0.0
        %502 = vmatpush1.msra.mxu0 0.0
        %503 = vmatprep.subr.mxu0 0.0
        %504 = vmatpush1.msra.mxu0 0.0
        %505 = vmatprep.subr.mxu0 0.0
        %506 = vmatpush1.msra.mxu0 0.0
        %507 = vmatprep.subr.mxu0 0.0
        %508 = vmatpush1.msra.mxu0 0.0
        %509 = vmatprep.subr.mxu0 0.0
        %510 = vmatpush1.msra.mxu0 0.0
        %511 = vmatprep.subr.mxu0 0.0
        %512 = vmatpush1.msra.mxu0 0.0
        %513 = vmatprep.subr.mxu0 0.0
        %514 = vmatpush1.msra.mxu0 0.0
        %515 = vmatprep.subr.mxu0 0.0
        %516 = vmatpush1.msra.mxu0 0.0
        %517 = vmatprep.subr.mxu0 0.0
        %518 = vmatpush1.msra.mxu0 %v492
        %519 = vmatprep.subr.mxu0 0.0
        %520 = vmatpush1.msra.mxu0 %v491
        %521 = vmatprep.subr.mxu0 0.0
        %522 = vmatpush1.msra.mxu0 %v490
        %523 = vmatprep.subr.mxu0 0.0
        %524 = vmatpush1.msra.mxu0 %v489
        %525 = vmatprep.subr.mxu0 0.0
        %526 = vmatpush2.msra.mxu0 0.0
        %527 = vmatprep.subr.mxu0 0.0
        %528 = vmatpush2.msra.mxu0 0.0
        %529 = vmatprep.subr.mxu0 0.0
        %530 = vmatpush2.msra.mxu0 0.0
        %531 = vmatprep.subr.mxu0 0.0
        %532 = vmatpush2.msra.mxu0 0.0
        %533 = vmatprep.subr.mxu0 0.0
        %534 = vmatpush2.msra.mxu0 0.0
        %535 = vmatprep.subr.mxu0 0.0
        %536 = vmatpush2.msra.mxu0 0.0
        %537 = vmatprep.subr.mxu0 0.0
        %538 = vmatpush2.msra.mxu0 0.0
        %539 = vmatprep.subr.mxu0 0.0
        %540 = vmatpush2.msra.mxu0 0.0
        %541 = vmatprep.subr.mxu0 0.0
        %542 = vmatpush2.msra.mxu0 0.0
        %543 = vmatprep.subr.mxu0 0.0
        %544 = vmatpush2.msra.mxu0 0.0
        %545 = vmatprep.subr.mxu0 0.0
        %546 = vmatpush2.msra.mxu0 0.0
        %547 = vmatprep.subr.mxu0 0.0
        %548 = vmatpush2.msra.mxu0 0.0
        %549 = vmatprep.subr.mxu0 0.0
        %550 = vmatpush2.msra.mxu0 0.0
        %551 = vmatprep.subr.mxu0 0.0
        %552 = vmatpush2.msra.mxu0 0.0
        %553 = vmatprep.subr.mxu0 0.0
        %554 = vmatpush2.msra.mxu0 0.0
        %555 = vmatprep.subr.mxu0 0.0
        %556 = vmatpush2.msra.mxu0 0.0
        %557 = vmatprep.mubr.f32.mxu0 0.0
        %558 = vmatmul.mubr.f32.gmra.mxu0 %v417
        %v559 = vpop.f32.mrf.mxu0
        %v560 = vadd.f32 0.0, %v559
        %v561 = vpop.f32.mrf.mxu0
        %562 = vdwg.mxu0
        %v563 = vxor.u32 %v486, 2147483648
        %v564 = vmul.f32 %v563, 1.442695
        %v565 = vpow.pop %v564
        %v566 = vadd.f32 %v565, 1.0
        %v567 = vrcp.pop %v566
        %v568 = vmul.f32 1.0, %v567
        %v569 = vmul.f32 %v486, %v568
        %v570 = vmul.f32 %v569, %v560
        %v571 = vld [vmem:[#allocation2] sm:$0xff]
        %v572 = vld [vmem:[%s324] sm:$0xff]
        %v573 = vld [vmem:[%s324 + $0x8] sm:$0xff]
        %vm574 = vcmask 130048
        %v576 = vsel %vm574, %v570, 0
        %578 = vmatprep.subr.mxu0 0.0
        %579 = vmatpush1.msra.mxu0 0.0
        %580 = vmatprep.subr.mxu0 0.0
        %581 = vmatpush1.msra.mxu0 0.0
        %582 = vmatprep.subr.mxu0 0.0
        %583 = vmatpush1.msra.mxu0 0.0
        %584 = vmatprep.subr.mxu0 0.0
        %585 = vmatpush1.msra.mxu0 0.0
        %586 = vmatprep.subr.mxu0 0.0
        %587 = vmatpush1.msra.mxu0 0.0
        %588 = vmatprep.subr.mxu0 0.0
        %589 = vmatpush1.msra.mxu0 0.0
        %590 = vmatprep.subr.mxu0 0.0
        %591 = vmatpush1.msra.mxu0 0.0
        %592 = vmatprep.subr.mxu0 0.0
        %593 = vmatpush1.msra.mxu0 0.0
        %594 = vmatprep.subr.mxu0 0.0
        %595 = vmatpush1.msra.mxu0 0.0
        %596 = vmatprep.subr.mxu0 0.0
        %597 = vmatpush1.msra.mxu0 0.0
        %598 = vmatprep.subr.mxu0 0.0
        %599 = vmatpush1.msra.mxu0 0.0
        %600 = vmatprep.subr.mxu0 0.0
        %601 = vmatpush1.msra.mxu0 0.0
        %602 = vmatprep.subr.mxu0 0.0
        %603 = vmatpush1.msra.mxu0 0.0
        %604 = vmatprep.subr.mxu0 0.0
        %605 = vmatpush1.msra.mxu0 0.0
        %606 = vmatprep.subr.mxu0 0.0
        %607 = vmatpush1.msra.mxu0 %v573
        %608 = vmatprep.subr.mxu0 0.0
        %609 = vmatpush1.msra.mxu0 %v572
        %610 = vmatprep.subr.mxu0 0.0
        %611 = vmatpush2.msra.mxu0 0.0
        %612 = vmatprep.subr.mxu0 0.0
        %613 = vmatpush2.msra.mxu0 0.0
        %614 = vmatprep.subr.mxu0 0.0
        %615 = vmatpush2.msra.mxu0 0.0
        %616 = vmatprep.subr.mxu0 0.0
        %617 = vmatpush2.msra.mxu0 0.0
        %618 = vmatprep.subr.mxu0 0.0
        %619 = vmatpush2.msra.mxu0 0.0
        %620 = vmatprep.subr.mxu0 0.0
        %621 = vmatpush2.msra.mxu0 0.0
        %622 = vmatprep.subr.mxu0 0.0
        %623 = vmatpush2.msra.mxu0 0.0
        %624 = vmatprep.subr.mxu0 0.0
        %625 = vmatpush2.msra.mxu0 0.0
        %626 = vmatprep.subr.mxu0 0.0
        %627 = vmatpush2.msra.mxu0 0.0
        %628 = vmatprep.subr.mxu0 0.0
        %629 = vmatpush2.msra.mxu0 0.0
        %630 = vmatprep.subr.mxu0 0.0
        %631 = vmatpush2.msra.mxu0 0.0
        %632 = vmatprep.subr.mxu0 0.0
        %633 = vmatpush2.msra.mxu0 0.0
        %634 = vmatprep.subr.mxu0 0.0
        %635 = vmatpush2.msra.mxu0 0.0
        %636 = vmatprep.subr.mxu0 0.0
        %637 = vmatpush2.msra.mxu0 0.0
        %638 = vmatprep.subr.mxu0 0.0
        %639 = vmatpush2.msra.mxu0 0.0
        %640 = vmatprep.subr.mxu0 0.0
        %641 = vmatpush2.msra.mxu0 0.0
        %642 = vmatprep.mubr.f32.mxu0 0.0
        %643 = vmatmul.mubr.f32.gmra.mxu0 %v576
        %v644 = vpop.f32.mrf.mxu0
        %v645 = vadd.f32 0.0, %v644
        %v646 = vpop.f32.mrf.mxu0
        %647 = vdwg.mxu0
        %v648 = vadd.f32 %v571, %v645
        %649 = vst.msk [vmem:[#allocation2] sm:$0xff] %vm415, %v648
        // Predicated region
        $region45: #{tpu_custom_call.1} parent=39 // pred_check
          %p650 = pneg %p327
        $region46: #{tpu_custom_call.1} parent=39 // pred_check_branch
          %652 = sbr.rel (%p650) target = $region48
        $region47: #{tpu_custom_call.1} parent=39 // pred_region
          %v653 = vld [vmem:[#allocation2] sm:$0xff]
          %654 = vst.msk [vmem:[%s300] sm:$0xff] %vm415, %v653
        $region48: #{tpu_custom_call.1} parent=39 // pred_fallthru
          _
        %s655 = sand.u32 %s169, 1
        %s656 = scalar_lea.sflag [#allocation4], %s655
        %s657 = sand.u32 %s169, 1
        %s658 = smul.addr %s657, 8
        %s659 = scalar_lea.vmem [#allocation3], %s658
        %s660 = sand.u32 %s195, 1
        %s661 = scalar_lea.sflag [#allocation6], %s660
        %s662 = sand.u32 %s195, 1
        %s663 = smul.addr %s662, 8
        %s664 = scalar_lea.vmem [#allocation5], %s663
        // Predicated region
        $region49: #{tpu_custom_call.1} parent=39 // pred_check
          %p665 = pneg %p179
        $region50: #{tpu_custom_call.1} parent=39 // pred_check_branch
          %667 = sbr.rel (%p665) target = $region52
        $region51: #{tpu_custom_call.1} parent=39 // pred_region
          %s669 = ssub.s32 128, 128
          %670 = vsyncadd %s656, %s669
          %s671 = smul.addr %s28, 128
          %s672 = scalar_lea.hbm %s5, %s671
          %s674 = sshll.u32 %s659, 4
          %s675 = int_to_ptr.vmem [resolvable:$true] %s674
          %677 = dma.vmem_to_hbm [thread:$0]  %s675, 128, %s672, %s656
        $region52: #{tpu_custom_call.1} parent=39 // pred_fallthru
          _
        // Predicated region
        $region53: #{tpu_custom_call.1} parent=39 // pred_check
          %p678 = pneg %p205
        $region54: #{tpu_custom_call.1} parent=39 // pred_check_branch
          %680 = sbr.rel (%p678) target = $region56
        $region55: #{tpu_custom_call.1} parent=39 // pred_region
          %s682 = ssub.s32 128, 128
          %683 = vsyncadd %s661, %s682
          %s684 = smul.addr %s28, 128
          %s685 = scalar_lea.hbm %s6, %s684
          %s687 = sshll.u32 %s664, 4
          %s688 = int_to_ptr.vmem [resolvable:$true] %s687
          %690 = dma.vmem_to_hbm [thread:$0]  %s688, 128, %s685, %s661
        $region56: #{tpu_custom_call.1} parent=39 // pred_fallthru
          _
      $region40: #{tpu_custom_call.1} parent=5 // pred_fallthru
        _
      %p691 = scmp.le.s32.totalorder 2, %s19
      // Predicated region
      $region57: #{tpu_custom_call.1} parent=5 // pred_check
        %p692 = pneg %p691
      $region58: #{tpu_custom_call.1} parent=5 // pred_check_branch
        %694 = sbr.rel (%p692) target = $region60
      $region59: #{tpu_custom_call.1} parent=5 // pred_region
        %s695 = ssub.s32 %s19, 2
        // Predicated region
        $region61: #{tpu_custom_call.1} parent=59 // pred_check
          %p696 = pneg %p185
        $region62: #{tpu_custom_call.1} parent=59 // pred_check_branch
          %698 = sbr.rel (%p696) target = $region64
        $region63: #{tpu_custom_call.1} parent=59 // pred_region
          %s699 = sand.u32 %s170, 1
          %s700 = scalar_lea.sflag [#allocation4], %s699
          %s701 = sand.u32 %s170, 1
          %s702 = smul.addr %s701, 8
          %s703 = scalar_lea.vmem [#allocation3], %s702
          %704 = dma.done %s700, 128
        $region64: #{tpu_custom_call.1} parent=59 // pred_fallthru
          _
        // Predicated region
        $region65: #{tpu_custom_call.1} parent=59 // pred_check
          %p705 = pneg %p211
        $region66: #{tpu_custom_call.1} parent=59 // pred_check_branch
          %707 = sbr.rel (%p705) target = $region68
        $region67: #{tpu_custom_call.1} parent=59 // pred_region
          %s708 = sand.u32 %s196, 1
          %s709 = scalar_lea.sflag [#allocation6], %s708
          %s710 = sand.u32 %s196, 1
          %s711 = smul.addr %s710, 8
          %s712 = scalar_lea.vmem [#allocation5], %s711
          %713 = dma.done %s709, 128
        $region68: #{tpu_custom_call.1} parent=59 // pred_fallthru
          _
      $region60: #{tpu_custom_call.1} parent=5 // pred_fallthru
        _
    $region6: #{tpu_custom_call.1} parent=1 // loop_footer
      %s23 = sadd.s32 1, %s19
    $region7: #{tpu_custom_call.1} parent=1 // loop_footer_branch
      %18 = sbr.rel target = $region3
    $region8: #{tpu_custom_call.1} parent=1 // loop_exit
      _
    %714 = vsyncpa [#allocation4], 1
    %s715 = scalar_lea.sflag [#allocation4], 1
    %716 = vsyncpa %s715, 1
    %717 = vsyncpa [#allocation6], 1
    %s718 = scalar_lea.sflag [#allocation6], 1
    %719 = vsyncpa %s718, 1

</llo_original>
